<compile_context>
chip_gen: v5e
topology: v5e:2x2
jax: 0.10.0
libtpu: 0.0.40
codegen_flags: <defaults>
</compile_context>

<pallas_src>
import functools

import jax
import jax.numpy as jnp
from jax.experimental import pallas as pl
from jax.experimental.pallas import tpu as pltpu

NUM_CLASSES = 10
IN_FEATURES = 28 * 28          # 784
HIDDEN = 256
TM_MAX = 1024                  # batch tile: bf16 x-tile ~1.6 MB, fits v5e/v6e/v7x easily


def _round_up(x, m):
    return ((x + m - 1) // m) * m


def _mlp_kernel(x_ref, w1_ref, b1_ref, w2_ref, b2_ref, o_ref):
    # fc1: (TM, 784) bf16 @ (784, 256) bf16 -> f32 MXU accumulator; bias add in f32.
    h = jnp.dot(x_ref[...], w1_ref[...], preferred_element_type=jnp.float32)
    h = h + b1_ref[...]
    # fc2 on the VMEM-resident hidden activation (no HBM round trip for h).
    out = jnp.dot(h.astype(jnp.bfloat16), w2_ref[...],
                  preferred_element_type=jnp.float32)
    out = out + b2_ref[...]
    o_ref[...] = out.astype(o_ref.dtype)


@jax.jit
def an_forward(x_nchw, w1, b1, w2, b2):
    """Forward pass of AN. x_nchw: (B, C, H, W) with C*H*W == 784. Returns f32 (B, 10)."""
    B = x_nchw.shape[0]
    x = x_nchw.reshape(B, -1).astype(jnp.bfloat16)      # Flatten + bf16 (halves HBM read)
    assert x.shape[1] == IN_FEATURES

    # Batch tiling: TM multiple of 8 (sublane), padded batch is a multiple of TM.
    tm = min(TM_MAX, _round_up(B, 8))
    b_pad = _round_up(B, tm)
    if b_pad != B:
        x = jnp.pad(x, ((0, b_pad - B), (0, 0)))

    # Weights shipped/stored as bf16 (native MXU input dtype); biases stay f32.
    w1_b = w1.astype(jnp.bfloat16)
    w2_b = w2.astype(jnp.bfloat16)
    b1_2d = b1.reshape(1, HIDDEN).astype(jnp.float32)
    b2_2d = b2.reshape(1, NUM_CLASSES).astype(jnp.float32)

    grid = (b_pad // tm,)

    flops = 2 * b_pad * IN_FEATURES * HIDDEN + 2 * b_pad * HIDDEN * NUM_CLASSES
    bytes_accessed = (b_pad * IN_FEATURES * 2            # x (bf16)
                      + IN_FEATURES * HIDDEN * 2         # w1 (bf16)
                      + HIDDEN * NUM_CLASSES * 2         # w2 (bf16)
                      + HIDDEN * 4 + NUM_CLASSES * 4     # biases (f32)
                      + b_pad * NUM_CLASSES * 4)         # out (f32)

    out = pl.pallas_call(
        _mlp_kernel,
        out_shape=jax.ShapeDtypeStruct((b_pad, NUM_CLASSES), jnp.float32),
        grid_spec=pltpu.PrefetchScalarGridSpec(
            num_scalar_prefetch=0,
            grid=grid,
            in_specs=[
                # x: one batch tile per grid step (double-buffered by Pallas).
                pl.BlockSpec((tm, IN_FEATURES), lambda i: (i, 0)),
                # Weights / biases: constant index_map -> resident in VMEM.
                pl.BlockSpec((IN_FEATURES, HIDDEN), lambda i: (0, 0)),
                pl.BlockSpec((1, HIDDEN), lambda i: (0, 0)),
                pl.BlockSpec((HIDDEN, NUM_CLASSES), lambda i: (0, 0)),
                pl.BlockSpec((1, NUM_CLASSES), lambda i: (0, 0)),
            ],
            out_specs=pl.BlockSpec((tm, NUM_CLASSES), lambda i: (i, 0)),
        ),
        compiler_params=pltpu.CompilerParams(
            dimension_semantics=("parallel",),            # megacore / v7x dual-TC split
            vmem_limit_bytes=32 * 1024 * 1024,            # explicit; safe on v7x's 64 MiB
        ),
        cost_estimate=pl.CostEstimate(
            flops=flops, transcendentals=0, bytes_accessed=bytes_accessed),
    )(x, w1_b, b1_2d, w2_b, b2_2d)

    return out[:B]


def init_params(key):
    """Deterministic init mimicking nn.Linear's uniform(-1/sqrt(fan_in), 1/sqrt(fan_in))."""
    k1, k2, k3, k4 = jax.random.split(key, 4)
    lim1 = 1.0 / jnp.sqrt(jnp.float32(IN_FEATURES))
    lim2 = 1.0 / jnp.sqrt(jnp.float32(HIDDEN))
    # Stored as (in, out): kernel computes x @ W (equivalent to torch's x @ W_t.T).
    w1 = jax.random.uniform(k1, (IN_FEATURES, HIDDEN), jnp.float32, -lim1, lim1)
    b1 = jax.random.uniform(k2, (HIDDEN,), jnp.float32, -lim1, lim1)
    w2 = jax.random.uniform(k3, (HIDDEN, NUM_CLASSES), jnp.float32, -lim2, lim2)
    b2 = jax.random.uniform(k4, (NUM_CLASSES,), jnp.float32, -lim2, lim2)
    return w1, b1, w2, b2


if __name__ == "__main__":
    key = jax.random.PRNGKey(0)
    k_x, k_p = jax.random.split(key)

    # MNIST-like input: batch=2, 1 channel, 28x28.
    x = jax.random.normal(k_x, (2, 1, 28, 28), jnp.float32)
    w1, b1, w2, b2 = init_params(k_p)

    out = jax.block_until_ready(an_forward(x, w1, b1, w2, b2))
    assert out.shape == (2, NUM_CLASSES)

    # Reference with the same bf16 operand rounding (f32 accumulate), matching kernel math.
    hp = jax.lax.Precision.HIGHEST
    xb = x.reshape(2, -1).astype(jnp.bfloat16).astype(jnp.float32)
    w1b = w1.astype(jnp.bfloat16).astype(jnp.float32)
    w2b = w2.astype(jnp.bfloat16).astype(jnp.float32)
    h_ref = jnp.dot(xb, w1b, precision=hp) + b1
    h_ref = h_ref.astype(jnp.bfloat16).astype(jnp.float32)
    ref = jnp.dot(h_ref, w2b, precision=hp) + b2
    assert jnp.allclose(out, ref, atol=1e-2, rtol=1e-2)

    print("KERNEL_OK")
</pallas_src>

<mosaic_0001>
module attributes {stable_mosaic.version = 11 : i64} {
  func.func @_mlp_kernel(%arg0: i32, %arg1: memref<8x784xbf16, #tpu.memory_space<vmem>>, %arg2: memref<784x256xbf16, #tpu.memory_space<vmem>>, %arg3: memref<1x256xf32, #tpu.memory_space<vmem>>, %arg4: memref<256x10xbf16, #tpu.memory_space<vmem>>, %arg5: memref<1x10xf32, #tpu.memory_space<vmem>>, %arg6: memref<8x10xf32, #tpu.memory_space<vmem>>) attributes {dimension_semantics = [#tpu.dimension_semantics<parallel>], iteration_bounds = array<i64: 1>, scalar_prefetch = 0 : i64, scratch_operands = 0 : i64, tpu.core_type = #tpu.core_type<tc>, window_params = [{transform_indices = @transform_0, window_bounds = array<i64: 8, 784>}, {pipeline_mode = #tpu.pipeline_mode<synchronous>, transform_indices = @transform_1, window_bounds = array<i64: 784, 256>}, {pipeline_mode = #tpu.pipeline_mode<synchronous>, transform_indices = @transform_2, window_bounds = array<i64: 1, 256>}, {pipeline_mode = #tpu.pipeline_mode<synchronous>, transform_indices = @transform_3, window_bounds = array<i64: 256, 10>}, {pipeline_mode = #tpu.pipeline_mode<synchronous>, transform_indices = @transform_4, window_bounds = array<i64: 1, 10>}, {transform_indices = @transform_5, window_bounds = array<i64: 8, 10>}]} {
    %c0 = arith.constant 0 : index
    %c0_0 = arith.constant 0 : index
    %0 = vector.load %arg1[%c0, %c0_0] : memref<8x784xbf16, #tpu.memory_space<vmem>>, vector<8x784xbf16>
    %c0_1 = arith.constant 0 : index
    %c0_2 = arith.constant 0 : index
    %1 = vector.load %arg2[%c0_1, %c0_2] : memref<784x256xbf16, #tpu.memory_space<vmem>>, vector<784x256xbf16>
    %cst = arith.constant dense<0.000000e+00> : vector<8x256xf32>
    %2 = tpu.matmul %0, %1, %cst {dimension_numbers = #tpu.dot_dimension_numbers<[1], [0], [0], [1], [0, 0, 1, 1], [], []>} : vector<8x784xbf16>, vector<784x256xbf16>, vector<8x256xf32> -> vector<8x256xf32>
    %c0_3 = arith.constant 0 : index
    %c0_4 = arith.constant 0 : index
    %3 = vector.load %arg3[%c0_3, %c0_4] : memref<1x256xf32, #tpu.memory_space<vmem>>, vector<1x256xf32>
    %4 = vector.broadcast %3 : vector<1x256xf32> to vector<8x256xf32>
    %5 = arith.addf %2, %4 : vector<8x256xf32>
    %6 = arith.truncf %5 : vector<8x256xf32> to vector<8x256xbf16>
    %c0_5 = arith.constant 0 : index
    %c0_6 = arith.constant 0 : index
    %7 = vector.load %arg4[%c0_5, %c0_6] : memref<256x10xbf16, #tpu.memory_space<vmem>>, vector<256x10xbf16>
    %cst_7 = arith.constant dense<0.000000e+00> : vector<8x10xf32>
    %8 = tpu.matmul %6, %7, %cst_7 {dimension_numbers = #tpu.dot_dimension_numbers<[1], [0], [0], [1], [0, 0, 1, 1], [], []>} : vector<8x256xbf16>, vector<256x10xbf16>, vector<8x10xf32> -> vector<8x10xf32>
    %c0_8 = arith.constant 0 : index
    %c0_9 = arith.constant 0 : index
    %9 = vector.load %arg5[%c0_8, %c0_9] : memref<1x10xf32, #tpu.memory_space<vmem>>, vector<1x10xf32>
    %10 = vector.broadcast %9 : vector<1x10xf32> to vector<8x10xf32>
    %11 = arith.addf %8, %10 : vector<8x10xf32>
    %c0_10 = arith.constant 0 : index
    %c0_11 = arith.constant 0 : index
    %12 = vector.load %arg6[%c0_10, %c0_11] : memref<8x10xf32, #tpu.memory_space<vmem>>, vector<8x10xf32>
    tpu.vector_store %arg6[%c0_10, %c0_11], %11 {strides = array<i32>} : memref<8x10xf32, #tpu.memory_space<vmem>>, vector<8x10xf32>,
    return
  }
  func.func @transform_0(%arg0: i32) -> (i32, i32) {
    %c0_i32 = arith.constant 0 : i32
    %c0_i32_0 = arith.constant 0 : i32
    return %arg0, %c0_i32 : i32, i32
  }
  func.func @transform_1(%arg0: i32) -> (i32, i32) {
    %c0_i32 = arith.constant 0 : i32
    %c0_i32_0 = arith.constant 0 : i32
    %c0_i32_1 = arith.constant 0 : i32
    return %c0_i32, %c0_i32_0 : i32, i32
  }
  func.func @transform_2(%arg0: i32) -> (i32, i32) {
    %c0_i32 = arith.constant 0 : i32
    %c0_i32_0 = arith.constant 0 : i32
    %c0_i32_1 = arith.constant 0 : i32
    return %c0_i32, %c0_i32_0 : i32, i32
  }
  func.func @transform_3(%arg0: i32) -> (i32, i32) {
    %c0_i32 = arith.constant 0 : i32
    %c0_i32_0 = arith.constant 0 : i32
    %c0_i32_1 = arith.constant 0 : i32
    return %c0_i32, %c0_i32_0 : i32, i32
  }
  func.func @transform_4(%arg0: i32) -> (i32, i32) {
    %c0_i32 = arith.constant 0 : i32
    %c0_i32_0 = arith.constant 0 : i32
    %c0_i32_1 = arith.constant 0 : i32
    return %c0_i32, %c0_i32_0 : i32, i32
  }
  func.func @transform_5(%arg0: i32) -> (i32, i32) {
    %c0_i32 = arith.constant 0 : i32
    %c0_i32_0 = arith.constant 0 : i32
    return %arg0, %c0_i32 : i32, i32
  }
}

</mosaic_0001>

<llo_original>
// kernel: an_forward.1
$region0: #{an_forward.1}
  #allocation0 [shape = 'u32[]', space=smem, size = 0x4, offset = 0x4, fixed_abs, tag = 'smem constant byte address 0x4 - core index']
  #allocation1 [shape = 'u32[72,128]{1,0:T(1,128)}', space=vmem, size = 0x9000, scoped, tag = 'internal scratch']
  %s0 = inlined_call_operand.vmem [shape: bf16[8,784], index: 0, kind: input, shape index: {}]
  %s1 = inlined_call_operand.vmem [shape: bf16[784,256], index: 1, kind: input, shape index: {}]
  %s2 = inlined_call_operand.vmem [shape: f32[1,256], index: 2, kind: input, shape index: {}]
  %s3 = inlined_call_operand.vmem [shape: bf16[256,10], index: 3, kind: input, shape index: {}]
  %s4 = inlined_call_operand.vmem [shape: f32[1,10], index: 4, kind: input, shape index: {}]
  %s5 = inlined_call_operand.vmem [shape: f32[8,10], index: 5, kind: output, shape index: {}]
  %s6 = sld [smem:[#allocation0]]
  $region30: #{an_forward.1} parent=0
    _
  %s8 = ssub.s32 1, %s6
  %s9 = scalar_select 0, %s8, %s6
  // Predicated region
  $region2: #{an_forward.1} parent=0 // pred_check
    _
  $region3: #{an_forward.1} parent=0 // pred_check_branch
    %11 = sbr.rel (0) target = $region5
  $region4: #{an_forward.1} parent=0 // pred_region
    _
  $region5: #{an_forward.1} parent=0 // pred_fallthru
    _
  // Predicated region
  $region6: #{an_forward.1} parent=0 // pred_check
    _
  $region7: #{an_forward.1} parent=0 // pred_check_branch
    %13 = sbr.rel (0) target = $region9
  $region8: #{an_forward.1} parent=0 // pred_region
    _
  $region9: #{an_forward.1} parent=0 // pred_fallthru
    _
  // Predicated region
  $region10: #{an_forward.1} parent=0 // pred_check
    _
  $region11: #{an_forward.1} parent=0 // pred_check_branch
    %15 = sbr.rel (0) target = $region13
  $region12: #{an_forward.1} parent=0 // pred_region
    _
  $region13: #{an_forward.1} parent=0 // pred_fallthru
    _
  // Predicated region
  $region14: #{an_forward.1} parent=0 // pred_check
    _
  $region15: #{an_forward.1} parent=0 // pred_check_branch
    %17 = sbr.rel (0) target = $region17
  $region16: #{an_forward.1} parent=0 // pred_region
    _
  $region17: #{an_forward.1} parent=0 // pred_fallthru
    _
  // Predicated region
  $region18: #{an_forward.1} parent=0 // pred_check
    _
  $region19: #{an_forward.1} parent=0 // pred_check_branch
    %19 = sbr.rel (0) target = $region21
  $region20: #{an_forward.1} parent=0 // pred_region
    _
  $region21: #{an_forward.1} parent=0 // pred_fallthru
    _
  %v21 = vld [vmem:[%s0] sm:$0xff]
  %v22 = vld [vmem:[%s0 + $0x8] sm:$0xff]
  %v23 = vld [vmem:[%s0 + $0x10] sm:$0xff]
  %v24 = vld [vmem:[%s0 + $0x18] sm:$0xf]
  %v25 = vld [vmem:[%s1] sm:$0xff]
  %v26 = vld [vmem:[%s1 + $0x8] sm:$0xff]
  %v27 = vld [vmem:[%s1 + $0x10] sm:$0xff]
  %v28 = vld [vmem:[%s1 + $0x18] sm:$0xff]
  %v29 = vld [vmem:[%s1 + $0x20] sm:$0xff]
  %v30 = vld [vmem:[%s1 + $0x28] sm:$0xff]
  %v31 = vld [vmem:[%s1 + $0x30] sm:$0xff]
  %v32 = vld [vmem:[%s1 + $0x38] sm:$0xff]
  %v33 = vld [vmem:[%s1 + $0x40] sm:$0xff]
  %v34 = vld [vmem:[%s1 + $0x48] sm:$0xff]
  %v35 = vld [vmem:[%s1 + $0x50] sm:$0xff]
  %v36 = vld [vmem:[%s1 + $0x58] sm:$0xff]
  %v37 = vld [vmem:[%s1 + $0x60] sm:$0xff]
  %v38 = vld [vmem:[%s1 + $0x68] sm:$0xff]
  %v39 = vld [vmem:[%s1 + $0x70] sm:$0xff]
  %v40 = vld [vmem:[%s1 + $0x78] sm:$0xff]
  %v41 = vld [vmem:[%s1 + $0x80] sm:$0xff]
  %v42 = vld [vmem:[%s1 + $0x88] sm:$0xff]
  %v43 = vld [vmem:[%s1 + $0x90] sm:$0xff]
  %v44 = vld [vmem:[%s1 + $0x98] sm:$0xff]
  %v45 = vld [vmem:[%s1 + $0xa0] sm:$0xff]
  %v46 = vld [vmem:[%s1 + $0xa8] sm:$0xff]
  %v47 = vld [vmem:[%s1 + $0xb0] sm:$0xff]
  %v48 = vld [vmem:[%s1 + $0xb8] sm:$0xff]
  %v49 = vld [vmem:[%s1 + $0xc0] sm:$0xff]
  %v50 = vld [vmem:[%s1 + $0xc8] sm:$0xff]
  %v51 = vld [vmem:[%s1 + $0xd0] sm:$0xff]
  %v52 = vld [vmem:[%s1 + $0xd8] sm:$0xff]
  %v53 = vld [vmem:[%s1 + $0xe0] sm:$0xff]
  %v54 = vld [vmem:[%s1 + $0xe8] sm:$0xff]
  %v55 = vld [vmem:[%s1 + $0xf0] sm:$0xff]
  %v56 = vld [vmem:[%s1 + $0xf8] sm:$0xff]
  %v57 = vld [vmem:[%s1 + $0x100] sm:$0xff]
  %v58 = vld [vmem:[%s1 + $0x108] sm:$0xff]
  %v59 = vld [vmem:[%s1 + $0x110] sm:$0xff]
  %v60 = vld [vmem:[%s1 + $0x118] sm:$0xff]
  %v61 = vld [vmem:[%s1 + $0x120] sm:$0xff]
  %v62 = vld [vmem:[%s1 + $0x128] sm:$0xff]
  %v63 = vld [vmem:[%s1 + $0x130] sm:$0xff]
  %v64 = vld [vmem:[%s1 + $0x138] sm:$0xff]
  %v65 = vld [vmem:[%s1 + $0x140] sm:$0xff]
  %v66 = vld [vmem:[%s1 + $0x148] sm:$0xff]
  %v67 = vld [vmem:[%s1 + $0x150] sm:$0xff]
  %v68 = vld [vmem:[%s1 + $0x158] sm:$0xff]
  %v69 = vld [vmem:[%s1 + $0x160] sm:$0xff]
  %v70 = vld [vmem:[%s1 + $0x168] sm:$0xff]
  %v71 = vld [vmem:[%s1 + $0x170] sm:$0xff]
  %v72 = vld [vmem:[%s1 + $0x178] sm:$0xff]
  %v73 = vld [vmem:[%s1 + $0x180] sm:$0xff]
  %v74 = vld [vmem:[%s1 + $0x188] sm:$0xff]
  %v75 = vld [vmem:[%s1 + $0x190] sm:$0xff]
  %v76 = vld [vmem:[%s1 + $0x198] sm:$0xff]
  %v77 = vld [vmem:[%s1 + $0x1a0] sm:$0xff]
  %v78 = vld [vmem:[%s1 + $0x1a8] sm:$0xff]
  %v79 = vld [vmem:[%s1 + $0x1b0] sm:$0xff]
  %v80 = vld [vmem:[%s1 + $0x1b8] sm:$0xff]
  %v81 = vld [vmem:[%s1 + $0x1c0] sm:$0xff]
  %v82 = vld [vmem:[%s1 + $0x1c8] sm:$0xff]
  %v83 = vld [vmem:[%s1 + $0x1d0] sm:$0xff]
  %v84 = vld [vmem:[%s1 + $0x1d8] sm:$0xff]
  %v85 = vld [vmem:[%s1 + $0x1e0] sm:$0xff]
  %v86 = vld [vmem:[%s1 + $0x1e8] sm:$0xff]
  %v87 = vld [vmem:[%s1 + $0x1f0] sm:$0xff]
  %v88 = vld [vmem:[%s1 + $0x1f8] sm:$0xff]
  %v89 = vld [vmem:[%s1 + $0x200] sm:$0xff]
  %v90 = vld [vmem:[%s1 + $0x208] sm:$0xff]
  %v91 = vld [vmem:[%s1 + $0x210] sm:$0xff]
  %v92 = vld [vmem:[%s1 + $0x218] sm:$0xff]
  %v93 = vld [vmem:[%s1 + $0x220] sm:$0xff]
  %v94 = vld [vmem:[%s1 + $0x228] sm:$0xff]
  %v95 = vld [vmem:[%s1 + $0x230] sm:$0xff]
  %v96 = vld [vmem:[%s1 + $0x238] sm:$0xff]
  %v97 = vld [vmem:[%s1 + $0x240] sm:$0xff]
  %v98 = vld [vmem:[%s1 + $0x248] sm:$0xff]
  %v99 = vld [vmem:[%s1 + $0x250] sm:$0xff]
  %v100 = vld [vmem:[%s1 + $0x258] sm:$0xff]
  %v101 = vld [vmem:[%s1 + $0x260] sm:$0xff]
  %v102 = vld [vmem:[%s1 + $0x268] sm:$0xff]
  %v103 = vld [vmem:[%s1 + $0x270] sm:$0xff]
  %v104 = vld [vmem:[%s1 + $0x278] sm:$0xff]
  %v105 = vld [vmem:[%s1 + $0x280] sm:$0xff]
  %v106 = vld [vmem:[%s1 + $0x288] sm:$0xff]
  %v107 = vld [vmem:[%s1 + $0x290] sm:$0xff]
  %v108 = vld [vmem:[%s1 + $0x298] sm:$0xff]
  %v109 = vld [vmem:[%s1 + $0x2a0] sm:$0xff]
  %v110 = vld [vmem:[%s1 + $0x2a8] sm:$0xff]
  %v111 = vld [vmem:[%s1 + $0x2b0] sm:$0xff]
  %v112 = vld [vmem:[%s1 + $0x2b8] sm:$0xff]
  %v113 = vld [vmem:[%s1 + $0x2c0] sm:$0xff]
  %v114 = vld [vmem:[%s1 + $0x2c8] sm:$0xff]
  %v115 = vld [vmem:[%s1 + $0x2d0] sm:$0xff]
  %v116 = vld [vmem:[%s1 + $0x2d8] sm:$0xff]
  %v117 = vld [vmem:[%s1 + $0x2e0] sm:$0xff]
  %v118 = vld [vmem:[%s1 + $0x2e8] sm:$0xff]
  %v119 = vld [vmem:[%s1 + $0x2f0] sm:$0xff]
  %v120 = vld [vmem:[%s1 + $0x2f8] sm:$0xff]
  %v121 = vld [vmem:[%s1 + $0x300] sm:$0xff]
  %v122 = vld [vmem:[%s1 + $0x308] sm:$0xff]
  %v123 = vld [vmem:[%s2] sm:$0x3]
  %v125 = vperm.slane %v123, 0
  %v126 = vperm.slane %v123, 1
  %v133 = vunpack.c.l.b16 %v21
  %v134 = vunpack.c.h.b16 %v21
  %v135 = vunpack.c.l.b16 %v22
  %v136 = vunpack.c.h.b16 %v22
  %v137 = vunpack.c.l.b16 %v23
  %v138 = vunpack.c.h.b16 %v23
  %v139 = vunpack.c.l.b16 %v24
  %v140 = vpack.c.b16 %v133, %v133
  %v141 = vpack.c.b16 %v134, %v134
  %v142 = vpack.c.b16 %v135, %v135
  %v143 = vpack.c.b16 %v136, %v136
  %v144 = vpack.c.b16 %v137, %v137
  %v145 = vpack.c.b16 %v138, %v138
  %v146 = vpack.c.b16 %v139, %v139
  %v251 = vunpack.c.l.b16 %v25
  %v252 = vunpack.c.h.b16 %v25
  %v253 = vunpack.c.l.b16 %v26
  %v254 = vunpack.c.h.b16 %v26
  %v255 = vunpack.c.l.b16 %v27
  %v256 = vunpack.c.h.b16 %v27
  %v257 = vunpack.c.l.b16 %v28
  %v258 = vunpack.c.h.b16 %v28
  %v259 = vunpack.c.l.b16 %v29
  %v260 = vunpack.c.h.b16 %v29
  %v261 = vunpack.c.l.b16 %v30
  %v262 = vunpack.c.h.b16 %v30
  %v263 = vunpack.c.l.b16 %v31
  %v264 = vunpack.c.h.b16 %v31
  %v265 = vunpack.c.l.b16 %v32
  %v266 = vunpack.c.h.b16 %v32
  %v267 = vunpack.c.l.b16 %v33
  %v268 = vunpack.c.h.b16 %v33
  %v269 = vunpack.c.l.b16 %v34
  %v270 = vunpack.c.h.b16 %v34
  %v271 = vunpack.c.l.b16 %v35
  %v272 = vunpack.c.h.b16 %v35
  %v273 = vunpack.c.l.b16 %v36
  %v274 = vunpack.c.h.b16 %v36
  %v275 = vunpack.c.l.b16 %v37
  %v276 = vunpack.c.h.b16 %v37
  %v277 = vunpack.c.l.b16 %v38
  %v278 = vunpack.c.h.b16 %v38
  %v279 = vunpack.c.l.b16 %v39
  %v280 = vunpack.c.h.b16 %v39
  %v281 = vunpack.c.l.b16 %v40
  %v282 = vunpack.c.h.b16 %v40
  %v283 = vunpack.c.l.b16 %v41
  %v284 = vunpack.c.h.b16 %v41
  %v285 = vunpack.c.l.b16 %v42
  %v286 = vunpack.c.h.b16 %v42
  %v287 = vunpack.c.l.b16 %v43
  %v288 = vunpack.c.h.b16 %v43
  %v289 = vunpack.c.l.b16 %v44
  %v290 = vunpack.c.h.b16 %v44
  %v291 = vunpack.c.l.b16 %v45
  %v292 = vunpack.c.h.b16 %v45
  %v293 = vunpack.c.l.b16 %v46
  %v294 = vunpack.c.h.b16 %v46
  %v295 = vunpack.c.l.b16 %v47
  %v296 = vunpack.c.h.b16 %v47
  %v297 = vunpack.c.l.b16 %v48
  %v298 = vunpack.c.h.b16 %v48
  %v299 = vunpack.c.l.b16 %v49
  %v300 = vunpack.c.h.b16 %v49
  %v301 = vunpack.c.l.b16 %v50
  %v302 = vunpack.c.h.b16 %v50
  %v303 = vunpack.c.l.b16 %v51
  %v304 = vunpack.c.h.b16 %v51
  %v305 = vunpack.c.l.b16 %v52
  %v306 = vunpack.c.h.b16 %v52
  %v307 = vunpack.c.l.b16 %v53
  %v308 = vunpack.c.h.b16 %v53
  %v309 = vunpack.c.l.b16 %v54
  %v310 = vunpack.c.h.b16 %v54
  %v311 = vunpack.c.l.b16 %v55
  %v312 = vunpack.c.h.b16 %v55
  %v313 = vunpack.c.l.b16 %v56
  %v314 = vunpack.c.h.b16 %v56
  %v315 = vunpack.c.l.b16 %v57
  %v316 = vunpack.c.h.b16 %v57
  %v317 = vunpack.c.l.b16 %v58
  %v318 = vunpack.c.h.b16 %v58
  %v319 = vunpack.c.l.b16 %v59
  %v320 = vunpack.c.h.b16 %v59
  %v321 = vunpack.c.l.b16 %v60
  %v322 = vunpack.c.h.b16 %v60
  %v323 = vunpack.c.l.b16 %v61
  %v324 = vunpack.c.h.b16 %v61
  %v325 = vunpack.c.l.b16 %v62
  %v326 = vunpack.c.h.b16 %v62
  %v327 = vunpack.c.l.b16 %v63
  %v328 = vunpack.c.h.b16 %v63
  %v329 = vunpack.c.l.b16 %v64
  %v330 = vunpack.c.h.b16 %v64
  %v331 = vunpack.c.l.b16 %v65
  %v332 = vunpack.c.h.b16 %v65
  %v333 = vunpack.c.l.b16 %v66
  %v334 = vunpack.c.h.b16 %v66
  %v335 = vunpack.c.l.b16 %v67
  %v336 = vunpack.c.h.b16 %v67
  %v337 = vunpack.c.l.b16 %v68
  %v338 = vunpack.c.h.b16 %v68
  %v339 = vunpack.c.l.b16 %v69
  %v340 = vunpack.c.h.b16 %v69
  %v341 = vunpack.c.l.b16 %v70
  %v342 = vunpack.c.h.b16 %v70
  %v343 = vunpack.c.l.b16 %v71
  %v344 = vunpack.c.h.b16 %v71
  %v345 = vunpack.c.l.b16 %v72
  %v346 = vunpack.c.h.b16 %v72
  %v347 = vunpack.c.l.b16 %v73
  %v348 = vunpack.c.h.b16 %v73
  %v349 = vunpack.c.l.b16 %v74
  %v350 = vunpack.c.h.b16 %v74
  %v351 = vunpack.c.l.b16 %v75
  %v352 = vunpack.c.h.b16 %v75
  %v353 = vunpack.c.l.b16 %v76
  %v354 = vunpack.c.h.b16 %v76
  %v355 = vunpack.c.l.b16 %v77
  %v356 = vunpack.c.h.b16 %v77
  %v357 = vunpack.c.l.b16 %v78
  %v358 = vunpack.c.h.b16 %v78
  %v359 = vunpack.c.l.b16 %v79
  %v360 = vunpack.c.h.b16 %v79
  %v361 = vunpack.c.l.b16 %v80
  %v362 = vunpack.c.h.b16 %v80
  %v363 = vunpack.c.l.b16 %v81
  %v364 = vunpack.c.h.b16 %v81
  %v365 = vunpack.c.l.b16 %v82
  %v366 = vunpack.c.h.b16 %v82
  %v367 = vunpack.c.l.b16 %v83
  %v368 = vunpack.c.h.b16 %v83
  %v369 = vunpack.c.l.b16 %v84
  %v370 = vunpack.c.h.b16 %v84
  %v371 = vunpack.c.l.b16 %v85
  %v372 = vunpack.c.h.b16 %v85
  %v373 = vunpack.c.l.b16 %v86
  %v374 = vunpack.c.h.b16 %v86
  %v375 = vunpack.c.l.b16 %v87
  %v376 = vunpack.c.h.b16 %v87
  %v377 = vunpack.c.l.b16 %v88
  %v378 = vunpack.c.h.b16 %v88
  %v379 = vunpack.c.l.b16 %v89
  %v380 = vunpack.c.h.b16 %v89
  %v381 = vunpack.c.l.b16 %v90
  %v382 = vunpack.c.h.b16 %v90
  %v383 = vunpack.c.l.b16 %v91
  %v384 = vunpack.c.h.b16 %v91
  %v385 = vunpack.c.l.b16 %v92
  %v386 = vunpack.c.h.b16 %v92
  %v387 = vunpack.c.l.b16 %v93
  %v388 = vunpack.c.h.b16 %v93
  %v389 = vunpack.c.l.b16 %v94
  %v390 = vunpack.c.h.b16 %v94
  %v391 = vunpack.c.l.b16 %v95
  %v392 = vunpack.c.h.b16 %v95
  %v393 = vunpack.c.l.b16 %v96
  %v394 = vunpack.c.h.b16 %v96
  %v395 = vunpack.c.l.b16 %v97
  %v396 = vunpack.c.h.b16 %v97
  %v397 = vunpack.c.l.b16 %v98
  %v398 = vunpack.c.h.b16 %v98
  %v399 = vunpack.c.l.b16 %v99
  %v400 = vunpack.c.h.b16 %v99
  %v401 = vunpack.c.l.b16 %v100
  %v402 = vunpack.c.h.b16 %v100
  %v403 = vunpack.c.l.b16 %v101
  %v404 = vunpack.c.h.b16 %v101
  %v405 = vunpack.c.l.b16 %v102
  %v406 = vunpack.c.h.b16 %v102
  %v407 = vunpack.c.l.b16 %v103
  %v408 = vunpack.c.h.b16 %v103
  %v409 = vunpack.c.l.b16 %v104
  %v410 = vunpack.c.h.b16 %v104
  %v411 = vunpack.c.l.b16 %v105
  %v412 = vunpack.c.h.b16 %v105
  %v413 = vunpack.c.l.b16 %v106
  %v414 = vunpack.c.h.b16 %v106
  %v415 = vunpack.c.l.b16 %v107
  %v416 = vunpack.c.h.b16 %v107
  %v417 = vunpack.c.l.b16 %v108
  %v418 = vunpack.c.h.b16 %v108
  %v419 = vunpack.c.l.b16 %v109
  %v420 = vunpack.c.h.b16 %v109
  %v421 = vunpack.c.l.b16 %v110
  %v422 = vunpack.c.h.b16 %v110
  %v423 = vunpack.c.l.b16 %v111
  %v424 = vunpack.c.h.b16 %v111
  %v425 = vunpack.c.l.b16 %v112
  %v426 = vunpack.c.h.b16 %v112
  %v427 = vunpack.c.l.b16 %v113
  %v428 = vunpack.c.h.b16 %v113
  %v429 = vunpack.c.l.b16 %v114
  %v430 = vunpack.c.h.b16 %v114
  %v431 = vunpack.c.l.b16 %v115
  %v432 = vunpack.c.h.b16 %v115
  %v433 = vunpack.c.l.b16 %v116
  %v434 = vunpack.c.h.b16 %v116
  %v435 = vunpack.c.l.b16 %v117
  %v436 = vunpack.c.h.b16 %v117
  %v437 = vunpack.c.l.b16 %v118
  %v438 = vunpack.c.h.b16 %v118
  %v439 = vunpack.c.l.b16 %v119
  %v440 = vunpack.c.h.b16 %v119
  %v441 = vunpack.c.l.b16 %v120
  %v442 = vunpack.c.h.b16 %v120
  %v443 = vunpack.c.l.b16 %v121
  %v444 = vunpack.c.h.b16 %v121
  %v445 = vunpack.c.l.b16 %v122
  %v446 = vunpack.c.h.b16 %v122
  %v447 = vpack.c.b16 %v253, %v251
  %v448 = vpack.c.b16 %v254, %v252
  %v449 = vpack.c.b16 %v257, %v255
  %v450 = vpack.c.b16 %v258, %v256
  %v451 = vpack.c.b16 %v261, %v259
  %v452 = vpack.c.b16 %v262, %v260
  %v453 = vpack.c.b16 %v265, %v263
  %v454 = vpack.c.b16 %v266, %v264
  %v455 = vpack.c.b16 %v269, %v267
  %v456 = vpack.c.b16 %v270, %v268
  %v457 = vpack.c.b16 %v273, %v271
  %v458 = vpack.c.b16 %v274, %v272
  %v459 = vpack.c.b16 %v277, %v275
  %v460 = vpack.c.b16 %v278, %v276
  %v461 = vpack.c.b16 %v281, %v279
  %v462 = vpack.c.b16 %v282, %v280
  %v463 = vpack.c.b16 %v285, %v283
  %v464 = vpack.c.b16 %v286, %v284
  %v465 = vpack.c.b16 %v289, %v287
  %v466 = vpack.c.b16 %v290, %v288
  %v467 = vpack.c.b16 %v293, %v291
  %v468 = vpack.c.b16 %v294, %v292
  %v469 = vpack.c.b16 %v297, %v295
  %v470 = vpack.c.b16 %v298, %v296
  %v471 = vpack.c.b16 %v301, %v299
  %v472 = vpack.c.b16 %v302, %v300
  %v473 = vpack.c.b16 %v305, %v303
  %v474 = vpack.c.b16 %v306, %v304
  %v475 = vpack.c.b16 %v309, %v307
  %v476 = vpack.c.b16 %v310, %v308
  %v477 = vpack.c.b16 %v313, %v311
  %v478 = vpack.c.b16 %v314, %v312
  %v479 = vpack.c.b16 %v317, %v315
  %v480 = vpack.c.b16 %v318, %v316
  %v481 = vpack.c.b16 %v321, %v319
  %v482 = vpack.c.b16 %v322, %v320
  %v483 = vpack.c.b16 %v325, %v323
  %v484 = vpack.c.b16 %v326, %v324
  %v485 = vpack.c.b16 %v329, %v327
  %v486 = vpack.c.b16 %v330, %v328
  %v487 = vpack.c.b16 %v333, %v331
  %v488 = vpack.c.b16 %v334, %v332
  %v489 = vpack.c.b16 %v337, %v335
  %v490 = vpack.c.b16 %v338, %v336
  %v491 = vpack.c.b16 %v341, %v339
  %v492 = vpack.c.b16 %v342, %v340
  %v493 = vpack.c.b16 %v345, %v343
  %v494 = vpack.c.b16 %v346, %v344
  %v495 = vpack.c.b16 %v349, %v347
  %v496 = vpack.c.b16 %v350, %v348
  %v497 = vpack.c.b16 %v353, %v351
  %v498 = vpack.c.b16 %v354, %v352
  %v499 = vpack.c.b16 %v357, %v355
  %v500 = vpack.c.b16 %v358, %v356
  %v501 = vpack.c.b16 %v361, %v359
  %v502 = vpack.c.b16 %v362, %v360
  %v503 = vpack.c.b16 %v365, %v363
  %v504 = vpack.c.b16 %v366, %v364
  %v505 = vpack.c.b16 %v369, %v367
  %v506 = vpack.c.b16 %v370, %v368
  %v507 = vpack.c.b16 %v373, %v371
  %v508 = vpack.c.b16 %v374, %v372
  %v509 = vpack.c.b16 %v377, %v375
  %v510 = vpack.c.b16 %v378, %v376
  %v511 = vpack.c.b16 %v381, %v379
  %v512 = vpack.c.b16 %v382, %v380
  %v513 = vpack.c.b16 %v385, %v383
  %v514 = vpack.c.b16 %v386, %v384
  %v515 = vpack.c.b16 %v389, %v387
  %v516 = vpack.c.b16 %v390, %v388
  %v517 = vpack.c.b16 %v393, %v391
  %v518 = vpack.c.b16 %v394, %v392
  %v519 = vpack.c.b16 %v397, %v395
  %v520 = vpack.c.b16 %v398, %v396
  %v521 = vpack.c.b16 %v401, %v399
  %v522 = vpack.c.b16 %v402, %v400
  %v523 = vpack.c.b16 %v405, %v403
  %v524 = vpack.c.b16 %v406, %v404
  %v525 = vpack.c.b16 %v409, %v407
  %v526 = vpack.c.b16 %v410, %v408
  %v527 = vpack.c.b16 %v413, %v411
  %v528 = vpack.c.b16 %v414, %v412
  %v529 = vpack.c.b16 %v417, %v415
  %v530 = vpack.c.b16 %v418, %v416
  %v531 = vpack.c.b16 %v421, %v419
  %v532 = vpack.c.b16 %v422, %v420
  %v533 = vpack.c.b16 %v425, %v423
  %v534 = vpack.c.b16 %v426, %v424
  %v535 = vpack.c.b16 %v429, %v427
  %v536 = vpack.c.b16 %v430, %v428
  %v537 = vpack.c.b16 %v433, %v431
  %v538 = vpack.c.b16 %v434, %v432
  %v539 = vpack.c.b16 %v437, %v435
  %v540 = vpack.c.b16 %v438, %v436
  %v541 = vpack.c.b16 %v441, %v439
  %v542 = vpack.c.b16 %v442, %v440
  %v543 = vpack.c.b16 %v445, %v443
  %v544 = vpack.c.b16 %v446, %v444
  %vm643 = vcmask 130048
  %v645 = vsel %vm643, %v146, 0
  %647 = vmatpush.bf16.msra.mxu0 %v461
  %648 = vmatpush.bf16.msra.mxu0 %v459
  %649 = vmatpush.bf16.msra.mxu0 %v457
  %650 = vmatpush.bf16.msra.mxu0 %v455
  %651 = vmatpush.bf16.msra.mxu0 %v453
  %652 = vmatpush.bf16.msra.mxu0 %v451
  %653 = vmatpush.bf16.msra.mxu0 %v449
  %654 = vmatpush.bf16.msra.mxu0 %v447
  %655 = vmatmul.bf16.gmra.mxu0 %v140
  %v656 = vpop.f32.mrf.mxu0
  %v657 = vadd.f32 %v125, %v656
  %v658 = vpop.f32.mrf.mxu0
  %659 = vdwg.mxu0
  %660 = vmatpush.bf16.msra.mxu0 %v477
  %661 = vmatpush.bf16.msra.mxu0 %v475
  %662 = vmatpush.bf16.msra.mxu0 %v473
  %663 = vmatpush.bf16.msra.mxu0 %v471
  %664 = vmatpush.bf16.msra.mxu0 %v469
  %665 = vmatpush.bf16.msra.mxu0 %v467
  %666 = vmatpush.bf16.msra.mxu0 %v465
  %667 = vmatpush.bf16.msra.mxu0 %v463
  %668 = vmatmul.bf16.gmra.mxu0 %v141
  %v669 = vpop.f32.mrf.mxu0
  %v670 = vadd.f32 %v657, %v669
  %v671 = vpop.f32.mrf.mxu0
  %672 = vdwg.mxu0
  %673 = vmatpush.bf16.msra.mxu0 %v493
  %674 = vmatpush.bf16.msra.mxu0 %v491
  %675 = vmatpush.bf16.msra.mxu0 %v489
  %676 = vmatpush.bf16.msra.mxu0 %v487
  %677 = vmatpush.bf16.msra.mxu0 %v485
  %678 = vmatpush.bf16.msra.mxu0 %v483
  %679 = vmatpush.bf16.msra.mxu0 %v481
  %680 = vmatpush.bf16.msra.mxu0 %v479
  %681 = vmatmul.bf16.gmra.mxu0 %v142
  %v682 = vpop.f32.mrf.mxu0
  %v683 = vadd.f32 %v670, %v682
  %v684 = vpop.f32.mrf.mxu0
  %685 = vdwg.mxu0
  %686 = vmatpush.bf16.msra.mxu0 %v509
  %687 = vmatpush.bf16.msra.mxu0 %v507
  %688 = vmatpush.bf16.msra.mxu0 %v505
  %689 = vmatpush.bf16.msra.mxu0 %v503
  %690 = vmatpush.bf16.msra.mxu0 %v501
  %691 = vmatpush.bf16.msra.mxu0 %v499
  %692 = vmatpush.bf16.msra.mxu0 %v497
  %693 = vmatpush.bf16.msra.mxu0 %v495
  %694 = vmatmul.bf16.gmra.mxu0 %v143
  %v695 = vpop.f32.mrf.mxu0
  %v696 = vadd.f32 %v683, %v695
  %v697 = vpop.f32.mrf.mxu0
  %698 = vdwg.mxu0
  %699 = vmatpush.bf16.msra.mxu0 %v525
  %700 = vmatpush.bf16.msra.mxu0 %v523
  %701 = vmatpush.bf16.msra.mxu0 %v521
  %702 = vmatpush.bf16.msra.mxu0 %v519
  %703 = vmatpush.bf16.msra.mxu0 %v517
  %704 = vmatpush.bf16.msra.mxu0 %v515
  %705 = vmatpush.bf16.msra.mxu0 %v513
  %706 = vmatpush.bf16.msra.mxu0 %v511
  %707 = vmatmul.bf16.gmra.mxu0 %v144
  %v708 = vpop.f32.mrf.mxu0
  %v709 = vadd.f32 %v696, %v708
  %v710 = vpop.f32.mrf.mxu0
  %711 = vdwg.mxu0
  %712 = vmatpush.bf16.msra.mxu0 %v541
  %713 = vmatpush.bf16.msra.mxu0 %v539
  %714 = vmatpush.bf16.msra.mxu0 %v537
  %715 = vmatpush.bf16.msra.mxu0 %v535
  %716 = vmatpush.bf16.msra.mxu0 %v533
  %717 = vmatpush.bf16.msra.mxu0 %v531
  %718 = vmatpush.bf16.msra.mxu0 %v529
  %719 = vmatpush.bf16.msra.mxu0 %v527
  %720 = vmatmul.bf16.gmra.mxu0 %v145
  %v721 = vpop.f32.mrf.mxu0
  %v722 = vadd.f32 %v709, %v721
  %v723 = vpop.f32.mrf.mxu0
  %724 = vdwg.mxu0
  %725 = vmatpush.bf16.msra.mxu0 0
  %726 = vmatpush.bf16.msra.mxu0 0
  %727 = vmatpush.bf16.msra.mxu0 0
  %728 = vmatpush.bf16.msra.mxu0 0
  %729 = vmatpush.bf16.msra.mxu0 0
  %730 = vmatpush.bf16.msra.mxu0 0
  %731 = vmatpush.bf16.msra.mxu0 0
  %732 = vmatpush.bf16.msra.mxu0 %v543
  %733 = vmatmul.bf16.gmra.mxu0 %v645
  %v734 = vpop.f32.mrf.mxu0
  %v735 = vadd.f32 %v722, %v734
  %v736 = vpop.f32.mrf.mxu0
  %737 = vdwg.mxu0
  %738 = vmatpush.bf16.msra.mxu0 %v462
  %739 = vmatpush.bf16.msra.mxu0 %v460
  %740 = vmatpush.bf16.msra.mxu0 %v458
  %741 = vmatpush.bf16.msra.mxu0 %v456
  %742 = vmatpush.bf16.msra.mxu0 %v454
  %743 = vmatpush.bf16.msra.mxu0 %v452
  %744 = vmatpush.bf16.msra.mxu0 %v450
  %745 = vmatpush.bf16.msra.mxu0 %v448
  %746 = vmatmul.bf16.gmra.mxu0 %v140
  %v747 = vpop.f32.mrf.mxu0
  %v748 = vadd.f32 %v126, %v747
  %v749 = vpop.f32.mrf.mxu0
  %750 = vdwg.mxu0
  %751 = vmatpush.bf16.msra.mxu0 %v478
  %752 = vmatpush.bf16.msra.mxu0 %v476
  %753 = vmatpush.bf16.msra.mxu0 %v474
  %754 = vmatpush.bf16.msra.mxu0 %v472
  %755 = vmatpush.bf16.msra.mxu0 %v470
  %756 = vmatpush.bf16.msra.mxu0 %v468
  %757 = vmatpush.bf16.msra.mxu0 %v466
  %758 = vmatpush.bf16.msra.mxu0 %v464
  %759 = vmatmul.bf16.gmra.mxu0 %v141
  %v760 = vpop.f32.mrf.mxu0
  %v761 = vadd.f32 %v748, %v760
  %v762 = vpop.f32.mrf.mxu0
  %763 = vdwg.mxu0
  %764 = vmatpush.bf16.msra.mxu0 %v494
  %765 = vmatpush.bf16.msra.mxu0 %v492
  %766 = vmatpush.bf16.msra.mxu0 %v490
  %767 = vmatpush.bf16.msra.mxu0 %v488
  %768 = vmatpush.bf16.msra.mxu0 %v486
  %769 = vmatpush.bf16.msra.mxu0 %v484
  %770 = vmatpush.bf16.msra.mxu0 %v482
  %771 = vmatpush.bf16.msra.mxu0 %v480
  %772 = vmatmul.bf16.gmra.mxu0 %v142
  %v773 = vpop.f32.mrf.mxu0
  %v774 = vadd.f32 %v761, %v773
  %v775 = vpop.f32.mrf.mxu0
  %776 = vdwg.mxu0
  %777 = vmatpush.bf16.msra.mxu0 %v510
  %778 = vmatpush.bf16.msra.mxu0 %v508
  %779 = vmatpush.bf16.msra.mxu0 %v506
  %780 = vmatpush.bf16.msra.mxu0 %v504
  %781 = vmatpush.bf16.msra.mxu0 %v502
  %782 = vmatpush.bf16.msra.mxu0 %v500
  %783 = vmatpush.bf16.msra.mxu0 %v498
  %784 = vmatpush.bf16.msra.mxu0 %v496
  %785 = vmatmul.bf16.gmra.mxu0 %v143
  %v786 = vpop.f32.mrf.mxu0
  %v787 = vadd.f32 %v774, %v786
  %v788 = vpop.f32.mrf.mxu0
  %789 = vdwg.mxu0
  %790 = vmatpush.bf16.msra.mxu0 %v526
  %791 = vmatpush.bf16.msra.mxu0 %v524
  %792 = vmatpush.bf16.msra.mxu0 %v522
  %793 = vmatpush.bf16.msra.mxu0 %v520
  %794 = vmatpush.bf16.msra.mxu0 %v518
  %795 = vmatpush.bf16.msra.mxu0 %v516
  %796 = vmatpush.bf16.msra.mxu0 %v514
  %797 = vmatpush.bf16.msra.mxu0 %v512
  %798 = vmatmul.bf16.gmra.mxu0 %v144
  %v799 = vpop.f32.mrf.mxu0
  %v800 = vadd.f32 %v787, %v799
  %v801 = vpop.f32.mrf.mxu0
  %802 = vdwg.mxu0
  %803 = vmatpush.bf16.msra.mxu0 %v542
  %804 = vmatpush.bf16.msra.mxu0 %v540
  %805 = vmatpush.bf16.msra.mxu0 %v538
  %806 = vmatpush.bf16.msra.mxu0 %v536
  %807 = vmatpush.bf16.msra.mxu0 %v534
  %808 = vmatpush.bf16.msra.mxu0 %v532
  %809 = vmatpush.bf16.msra.mxu0 %v530
  %810 = vmatpush.bf16.msra.mxu0 %v528
  %811 = vmatmul.bf16.gmra.mxu0 %v145
  %v812 = vpop.f32.mrf.mxu0
  %v813 = vadd.f32 %v800, %v812
  %v814 = vpop.f32.mrf.mxu0
  %815 = vdwg.mxu0
  %816 = vmatpush.bf16.msra.mxu0 0
  %817 = vmatpush.bf16.msra.mxu0 0
  %818 = vmatpush.bf16.msra.mxu0 0
  %819 = vmatpush.bf16.msra.mxu0 0
  %820 = vmatpush.bf16.msra.mxu0 0
  %821 = vmatpush.bf16.msra.mxu0 0
  %822 = vmatpush.bf16.msra.mxu0 0
  %823 = vmatpush.bf16.msra.mxu0 %v544
  %824 = vmatmul.bf16.gmra.mxu0 %v645
  %v825 = vpop.f32.mrf.mxu0
  %v826 = vadd.f32 %v813, %v825
  %v827 = vpop.f32.mrf.mxu0
  %828 = vdwg.mxu0
  %v829 = vpack.c.bf16 %v735, %v735
  %v830 = vpack.c.bf16 %v826, %v826
  %v831 = vld [vmem:[%s3] sm:$0xf]
  %v832 = vld [vmem:[%s3 + $0x4] sm:$0xf]
  %v833 = vld [vmem:[%s3 + $0x8] sm:$0xf]
  %v834 = vld [vmem:[%s3 + $0xc] sm:$0xf]
  %v835 = vld [vmem:[%s3 + $0x10] sm:$0xf]
  %v836 = vld [vmem:[%s3 + $0x14] sm:$0xf]
  %v837 = vld [vmem:[%s3 + $0x18] sm:$0xf]
  %v838 = vld [vmem:[%s3 + $0x1c] sm:$0xf]
  %v839 = vld [vmem:[%s3 + $0x20] sm:$0xf]
  %v840 = vld [vmem:[%s3 + $0x24] sm:$0xf]
  %v841 = vld [vmem:[%s3 + $0x28] sm:$0xf]
  %v842 = vld [vmem:[%s3 + $0x2c] sm:$0xf]
  %v843 = vld [vmem:[%s3 + $0x30] sm:$0xf]
  %v844 = vld [vmem:[%s3 + $0x34] sm:$0xf]
  %v845 = vld [vmem:[%s3 + $0x38] sm:$0xf]
  %v846 = vld [vmem:[%s3 + $0x3c] sm:$0xf]
  %v847 = vld [vmem:[%s3 + $0x40] sm:$0xf]
  %v848 = vld [vmem:[%s3 + $0x44] sm:$0xf]
  %v849 = vld [vmem:[%s3 + $0x48] sm:$0xf]
  %v850 = vld [vmem:[%s3 + $0x4c] sm:$0xf]
  %v851 = vld [vmem:[%s3 + $0x50] sm:$0xf]
  %v852 = vld [vmem:[%s3 + $0x54] sm:$0xf]
  %v853 = vld [vmem:[%s3 + $0x58] sm:$0xf]
  %v854 = vld [vmem:[%s3 + $0x5c] sm:$0xf]
  %v855 = vld [vmem:[%s3 + $0x60] sm:$0xf]
  %v856 = vld [vmem:[%s3 + $0x64] sm:$0xf]
  %v857 = vld [vmem:[%s3 + $0x68] sm:$0xf]
  %v858 = vld [vmem:[%s3 + $0x6c] sm:$0xf]
  %v859 = vld [vmem:[%s3 + $0x70] sm:$0xf]
  %v860 = vld [vmem:[%s3 + $0x74] sm:$0xf]
  %v861 = vld [vmem:[%s3 + $0x78] sm:$0xf]
  %v862 = vld [vmem:[%s3 + $0x7c] sm:$0xf]
  %v863 = vld [vmem:[%s4] sm:$0x1]
  %v865 = vperm.slane %v863, 0
  %v899 = vunpack.c.l.b16 %v831
  %v900 = vunpack.c.l.b16 %v832
  %v901 = vunpack.c.l.b16 %v833
  %v902 = vunpack.c.l.b16 %v834
  %v903 = vunpack.c.l.b16 %v835
  %v904 = vunpack.c.l.b16 %v836
  %v905 = vunpack.c.l.b16 %v837
  %v906 = vunpack.c.l.b16 %v838
  %v907 = vunpack.c.l.b16 %v839
  %v908 = vunpack.c.l.b16 %v840
  %v909 = vunpack.c.l.b16 %v841
  %v910 = vunpack.c.l.b16 %v842
  %v911 = vunpack.c.l.b16 %v843
  %v912 = vunpack.c.l.b16 %v844
  %v913 = vunpack.c.l.b16 %v845
  %v914 = vunpack.c.l.b16 %v846
  %v915 = vunpack.c.l.b16 %v847
  %v916 = vunpack.c.l.b16 %v848
  %v917 = vunpack.c.l.b16 %v849
  %v918 = vunpack.c.l.b16 %v850
  %v919 = vunpack.c.l.b16 %v851
  %v920 = vunpack.c.l.b16 %v852
  %v921 = vunpack.c.l.b16 %v853
  %v922 = vunpack.c.l.b16 %v854
  %v923 = vunpack.c.l.b16 %v855
  %v924 = vunpack.c.l.b16 %v856
  %v925 = vunpack.c.l.b16 %v857
  %v926 = vunpack.c.l.b16 %v858
  %v927 = vunpack.c.l.b16 %v859
  %v928 = vunpack.c.l.b16 %v860
  %v929 = vunpack.c.l.b16 %v861
  %v930 = vunpack.c.l.b16 %v862
  %v931 = vpack.c.b16 %v900, %v899
  %v932 = vpack.c.b16 %v902, %v901
  %v933 = vpack.c.b16 %v904, %v903
  %v934 = vpack.c.b16 %v906, %v905
  %v935 = vpack.c.b16 %v908, %v907
  %v936 = vpack.c.b16 %v910, %v909
  %v937 = vpack.c.b16 %v912, %v911
  %v938 = vpack.c.b16 %v914, %v913
  %v939 = vpack.c.b16 %v916, %v915
  %v940 = vpack.c.b16 %v918, %v917
  %v941 = vpack.c.b16 %v920, %v919
  %v942 = vpack.c.b16 %v922, %v921
  %v943 = vpack.c.b16 %v924, %v923
  %v944 = vpack.c.b16 %v926, %v925
  %v945 = vpack.c.b16 %v928, %v927
  %v946 = vpack.c.b16 %v930, %v929
  %963 = vmatpush.bf16.msra.mxu0 %v938
  %964 = vmatpush.bf16.msra.mxu0 %v937
  %965 = vmatpush.bf16.msra.mxu0 %v936
  %966 = vmatpush.bf16.msra.mxu0 %v935
  %967 = vmatpush.bf16.msra.mxu0 %v934
  %968 = vmatpush.bf16.msra.mxu0 %v933
  %969 = vmatpush.bf16.msra.mxu0 %v932
  %970 = vmatpush.bf16.msra.mxu0 %v931
  %971 = vmatmul.bf16.gmra.mxu0 %v829
  %v972 = vpop.f32.mrf.mxu0
  %v973 = vadd.f32 %v865, %v972
  %v974 = vpop.f32.mrf.mxu0
  %975 = vdwg.mxu0
  %976 = vmatpush.bf16.msra.mxu0 %v946
  %977 = vmatpush.bf16.msra.mxu0 %v945
  %978 = vmatpush.bf16.msra.mxu0 %v944
  %979 = vmatpush.bf16.msra.mxu0 %v943
  %980 = vmatpush.bf16.msra.mxu0 %v942
  %981 = vmatpush.bf16.msra.mxu0 %v941
  %982 = vmatpush.bf16.msra.mxu0 %v940
  %983 = vmatpush.bf16.msra.mxu0 %v939
  %984 = vmatmul.bf16.gmra.mxu0 %v830
  %v985 = vpop.f32.mrf.mxu0
  %v986 = vadd.f32 %v973, %v985
  %v987 = vpop.f32.mrf.mxu0
  %988 = vdwg.mxu0
  %vm989 = vcmask 80896
  %990 = vst.msk [vmem:[%s5] sm:$0xff] %vm989, %v986
  // Predicated region
  $region22: #{an_forward.1} parent=0 // pred_check
    _
  $region23: #{an_forward.1} parent=0 // pred_check_branch
    %992 = sbr.rel (0) target = $region25
  $region24: #{an_forward.1} parent=0 // pred_region
    _
  $region25: #{an_forward.1} parent=0 // pred_fallthru
    _
  // Predicated region
  $region26: #{an_forward.1} parent=0 // pred_check
    _
  $region27: #{an_forward.1} parent=0 // pred_check_branch
    %994 = sbr.rel (0) target = $region29
  $region28: #{an_forward.1} parent=0 // pred_region
    _
  $region29: #{an_forward.1} parent=0 // pred_fallthru
    _

</llo_original>
